<compile_context>
chip_gen: v6e
topology: v6e:2x2x1
jax: 0.10.0
libtpu: 0.0.40
codegen_flags: <defaults>
</compile_context>

<pallas_src>
import functools

import jax
import jax.numpy as jnp
from jax import lax
from jax.experimental import pallas as pl
from jax.experimental.pallas import tpu as pltpu

KH, KW = 4, 8          # kernel_size = [4, 8]
PAD_H, PAD_W = 2, 4    # padding     = [2, 4]
# stride = [1, 1], dilation = 1


def _argmax_merge(a, b):
    """Merge (value, offset); `a` precedes `b` in PyTorch's window scan order.

    Keeps `a` on ties -> first-occurrence argmax, matching PyTorch.
    # TODO(synk): PyTorch also propagates NaN (picks the NaN element); this
    # merge keeps the previous max instead.  Irrelevant for this module.
    """
    va, oa = a
    vb, ob = b
    keep_a = va >= vb
    return jnp.where(keep_a, va, vb), jnp.where(keep_a, oa, ob)


def _tree_reduce(pairs):
    """Order-preserving balanced reduction (associative first-occurrence argmax)."""
    while len(pairs) > 1:
        nxt = [_argmax_merge(pairs[j], pairs[j + 1])
               for j in range(0, len(pairs) - 1, 2)]
        if len(pairs) % 2:
            nxt.append(pairs[-1])
        pairs = nxt
    return pairs[0]


def _maxpool_kernel(x_ref, val_ref, idx_ref, *, W, Ho, Wo):
    # x_ref:   (T, Hp, Wp)  -inf-padded input planes for this NC tile
    # val_ref: (T, Ho, Wo)  pooled max values
    # idx_ref: (T, Ho, Wo)  flat argmax indices into the unpadded (H, W) plane
    x = x_ref[...]

    # Stage 1: reduce over kw (lane-axis shifts of the single input slab),
    # tracking the winning kw (0..KW-1) per padded row.
    kw_pairs = []
    for kw in range(KW):
        v = x[:, :, kw:kw + Wo]                 # (T, Hp, Wo)
        kw_pairs.append((v, jnp.int32(kw)))
    rmax, rkw = _tree_reduce(kw_pairs)          # (T, Hp, Wo) each

    # Stage 2: reduce over kh (cheap second-minor shifts), folding kh into the
    # flat-index offset: off = (kh - PAD_H) * W + (kw - PAD_W).
    kh_pairs = []
    for kh in range(KH):
        v = rmax[:, kh:kh + Ho, :]              # (T, Ho, Wo)
        o = rkw[:, kh:kh + Ho, :] + jnp.int32((kh - PAD_H) * W - PAD_W)
        kh_pairs.append((v, o))
    val, off = _tree_reduce(kh_pairs)           # (T, Ho, Wo)

    # idx = (oh - PAD_H + kh) * W + (ow - PAD_W + kw) = oh*W + ow + off
    oh = lax.broadcasted_iota(jnp.int32, val.shape, dimension=1)
    ow = lax.broadcasted_iota(jnp.int32, val.shape, dimension=2)

    val_ref[...] = val.astype(val_ref.dtype)
    idx_ref[...] = oh * jnp.int32(W) + ow + off


def max_pool2d_with_indices_4x8(x):
    """x: (N, C, H, W) float32 -> (values, indices), both (N, C, H+1, W+1)."""
    N, C, H, W = x.shape
    Hp, Wp = H + 2 * PAD_H, W + 2 * PAD_W
    Ho, Wo = Hp - KH + 1, Wp - KW + 1
    NC = N * C

    # NC tile: as large as a conservative VMEM budget allows (safe under the
    # scoped-VMEM defaults on v5e/v6e/v7x), but keep >= 2 grid steps so the
    # parallel grid axis can shard across v7x's two TensorCores.
    bytes_per_plane = 4 * (2 * Hp * Wp          # double-buffered input block
                           + 2 * 2 * Ho * Wo    # double-buffered val+idx blocks
                           + 2 * Hp * Wo        # stage-1 intermediates
                           + 4 * Ho * Wo)       # working-temp headroom
    vmem_budget = 4 << 20
    tile_nc = max(1, min(NC, vmem_budget // bytes_per_plane))
    if NC >= 2:
        tile_nc = min(tile_nc, (NC + 1) // 2)
    num_tiles = (NC + tile_nc - 1) // tile_nc
    ncp = num_tiles * tile_nc

    # Wrapper-side layout plumbing: flatten (N, C), pad spatially with -inf
    # (implicit max-pool padding), pad NC up to a multiple of the tile.
    xp = jnp.pad(
        x.reshape(NC, H, W),
        ((0, ncp - NC), (PAD_H, PAD_H), (PAD_W, PAD_W)),
        constant_values=-jnp.inf,
    )

    kernel = functools.partial(_maxpool_kernel, W=W, Ho=Ho, Wo=Wo)

    vals, idxs = pl.pallas_call(
        kernel,
        out_shape=(
            jax.ShapeDtypeStruct((ncp, Ho, Wo), x.dtype),
            # TODO(synk): PyTorch returns int64 indices; int32 carries the
            # identical values for H*W < 2**31 (default JAX config is x32).
            jax.ShapeDtypeStruct((ncp, Ho, Wo), jnp.int32),
        ),
        grid_spec=pltpu.PrefetchScalarGridSpec(
            num_scalar_prefetch=0,
            grid=(num_tiles,),
            in_specs=[pl.BlockSpec((tile_nc, Hp, Wp), lambda i: (i, 0, 0))],
            out_specs=[
                pl.BlockSpec((tile_nc, Ho, Wo), lambda i: (i, 0, 0)),
                pl.BlockSpec((tile_nc, Ho, Wo), lambda i: (i, 0, 0)),
            ],
        ),
        compiler_params=pltpu.CompilerParams(
            dimension_semantics=("parallel",),
        ),
        cost_estimate=pl.CostEstimate(
            flops=2 * ncp * Ho * Wo * KH * KW,
            transcendentals=0,
            bytes_accessed=4 * ncp * (Hp * Wp + 2 * Ho * Wo),
        ),
    )(xp)

    vals = vals[:NC].reshape(N, C, Ho, Wo)
    idxs = idxs[:NC].reshape(N, C, Ho, Wo)
    return vals, idxs


def _reference(x):
    """Pure-JAX reference: aten.max_pool2d_with_indices([4,8], [1,1], [2,4], 1)."""
    N, C, H, W = x.shape
    Ho = H + 2 * PAD_H - KH + 1
    Wo = W + 2 * PAD_W - KW + 1
    xp = jnp.pad(x, ((0, 0), (0, 0), (PAD_H, PAD_H), (PAD_W, PAD_W)),
                 constant_values=-jnp.inf)
    oh = jnp.arange(Ho, dtype=jnp.int32)[:, None]
    ow = jnp.arange(Wo, dtype=jnp.int32)[None, :]
    best = None
    bidx = None
    for kh in range(KH):
        for kw in range(KW):
            v = xp[:, :, kh:kh + Ho, kw:kw + Wo]
            i = jnp.broadcast_to(
                ((oh + kh - PAD_H) * W + (ow + kw - PAD_W))[None, None],
                (N, C, Ho, Wo)).astype(jnp.int32)
            if best is None:
                best, bidx = v, i
            else:
                m = v > best                      # strict '>' => first occurrence
                best = jnp.where(m, v, best)
                bidx = jnp.where(m, i, bidx)
    return best, bidx


if __name__ == "__main__":
    key = jax.random.PRNGKey(0)
    N, C, H, W = 2, 4, 16, 16

    # All-negative values (the module's namesake case): verifies that the
    # implicit padding behaves as -inf, not zero.
    x_neg = jax.random.normal(key, (N, C, H, W), dtype=jnp.float32) - 100.0
    # All-equal input exercises the first-occurrence tie-break.
    x_tie = -jnp.ones((N, C, H, W), dtype=jnp.float32)

    for x in (x_neg, x_tie):
        vals, idxs = max_pool2d_with_indices_4x8(x)
        jax.block_until_ready((vals, idxs))
        rv, ri = _reference(x)
        assert vals.shape == (N, C, H + 1, W + 1)
        assert idxs.shape == (N, C, H + 1, W + 1)
        assert jnp.array_equal(vals, rv), "values mismatch"
        assert jnp.array_equal(idxs, ri), "indices mismatch"

    print("KERNEL_OK")
</pallas_src>

<mosaic_0001>
module attributes {stable_mosaic.version = 11 : i64} {
  func.func @_maxpool_kernel(%arg0: i32, %arg1: memref<4x20x24xf32, #tpu.memory_space<vmem>>, %arg2: memref<4x17x17xf32, #tpu.memory_space<vmem>>, %arg3: memref<4x17x17xi32, #tpu.memory_space<vmem>>) attributes {dimension_semantics = [#tpu.dimension_semantics<parallel>], iteration_bounds = array<i64: 2>, scalar_prefetch = 0 : i64, scratch_operands = 0 : i64, tpu.core_type = #tpu.core_type<tc>, window_params = [{transform_indices = @transform_0, window_bounds = array<i64: 4, 20, 24>}, {transform_indices = @transform_1, window_bounds = array<i64: 4, 17, 17>}, {transform_indices = @transform_2, window_bounds = array<i64: 4, 17, 17>}]} {
    %c0 = arith.constant 0 : index
    %c0_0 = arith.constant 0 : index
    %c0_1 = arith.constant 0 : index
    %0 = vector.load %arg1[%c0, %c0_0, %c0_1] : memref<4x20x24xf32, #tpu.memory_space<vmem>>, vector<4x20x24xf32>
    %1 = vector.extract_strided_slice %0 {offsets = [0, 0, 0], sizes = [4, 20, 17], strides = [1, 1, 1]} : vector<4x20x24xf32> to vector<4x20x17xf32>
    %2 = vector.extract_strided_slice %0 {offsets = [0, 0, 1], sizes = [4, 20, 17], strides = [1, 1, 1]} : vector<4x20x24xf32> to vector<4x20x17xf32>
    %3 = vector.extract_strided_slice %0 {offsets = [0, 0, 2], sizes = [4, 20, 17], strides = [1, 1, 1]} : vector<4x20x24xf32> to vector<4x20x17xf32>
    %4 = vector.extract_strided_slice %0 {offsets = [0, 0, 3], sizes = [4, 20, 17], strides = [1, 1, 1]} : vector<4x20x24xf32> to vector<4x20x17xf32>
    %5 = vector.extract_strided_slice %0 {offsets = [0, 0, 4], sizes = [4, 20, 17], strides = [1, 1, 1]} : vector<4x20x24xf32> to vector<4x20x17xf32>
    %6 = vector.extract_strided_slice %0 {offsets = [0, 0, 5], sizes = [4, 20, 17], strides = [1, 1, 1]} : vector<4x20x24xf32> to vector<4x20x17xf32>
    %7 = vector.extract_strided_slice %0 {offsets = [0, 0, 6], sizes = [4, 20, 17], strides = [1, 1, 1]} : vector<4x20x24xf32> to vector<4x20x17xf32>
    %8 = vector.extract_strided_slice %0 {offsets = [0, 0, 7], sizes = [4, 20, 17], strides = [1, 1, 1]} : vector<4x20x24xf32> to vector<4x20x17xf32>
    %9 = arith.cmpf oge, %1, %2 : vector<4x20x17xf32>
    %10 = arith.select %9, %1, %2 : vector<4x20x17xi1>, vector<4x20x17xf32>
    %c0_i32 = arith.constant 0 : i32
    %c1_i32 = arith.constant 1 : i32
    %11 = vector.broadcast %c0_i32 : i32 to vector<4x20x17xi32>
    %12 = vector.broadcast %c1_i32 : i32 to vector<4x20x17xi32>
    %13 = arith.select %9, %11, %12 : vector<4x20x17xi1>, vector<4x20x17xi32>
    %14 = arith.cmpf oge, %3, %4 : vector<4x20x17xf32>
    %15 = arith.select %14, %3, %4 : vector<4x20x17xi1>, vector<4x20x17xf32>
    %c2_i32 = arith.constant 2 : i32
    %c3_i32 = arith.constant 3 : i32
    %16 = vector.broadcast %c2_i32 : i32 to vector<4x20x17xi32>
    %17 = vector.broadcast %c3_i32 : i32 to vector<4x20x17xi32>
    %18 = arith.select %14, %16, %17 : vector<4x20x17xi1>, vector<4x20x17xi32>
    %19 = arith.cmpf oge, %5, %6 : vector<4x20x17xf32>
    %20 = arith.select %19, %5, %6 : vector<4x20x17xi1>, vector<4x20x17xf32>
    %c4_i32 = arith.constant 4 : i32
    %c5_i32 = arith.constant 5 : i32
    %21 = vector.broadcast %c4_i32 : i32 to vector<4x20x17xi32>
    %22 = vector.broadcast %c5_i32 : i32 to vector<4x20x17xi32>
    %23 = arith.select %19, %21, %22 : vector<4x20x17xi1>, vector<4x20x17xi32>
    %24 = arith.cmpf oge, %7, %8 : vector<4x20x17xf32>
    %25 = arith.select %24, %7, %8 : vector<4x20x17xi1>, vector<4x20x17xf32>
    %c6_i32 = arith.constant 6 : i32
    %c7_i32 = arith.constant 7 : i32
    %26 = vector.broadcast %c6_i32 : i32 to vector<4x20x17xi32>
    %27 = vector.broadcast %c7_i32 : i32 to vector<4x20x17xi32>
    %28 = arith.select %24, %26, %27 : vector<4x20x17xi1>, vector<4x20x17xi32>
    %29 = arith.cmpf oge, %10, %15 : vector<4x20x17xf32>
    %30 = arith.select %29, %10, %15 : vector<4x20x17xi1>, vector<4x20x17xf32>
    %31 = arith.select %29, %13, %18 : vector<4x20x17xi1>, vector<4x20x17xi32>
    %32 = arith.cmpf oge, %20, %25 : vector<4x20x17xf32>
    %33 = arith.select %32, %20, %25 : vector<4x20x17xi1>, vector<4x20x17xf32>
    %34 = arith.select %32, %23, %28 : vector<4x20x17xi1>, vector<4x20x17xi32>
    %35 = arith.cmpf oge, %30, %33 : vector<4x20x17xf32>
    %36 = arith.select %35, %30, %33 : vector<4x20x17xi1>, vector<4x20x17xf32>
    %37 = arith.select %35, %31, %34 : vector<4x20x17xi1>, vector<4x20x17xi32>
    %38 = vector.extract_strided_slice %36 {offsets = [0, 0, 0], sizes = [4, 17, 17], strides = [1, 1, 1]} : vector<4x20x17xf32> to vector<4x17x17xf32>
    %39 = vector.extract_strided_slice %37 {offsets = [0, 0, 0], sizes = [4, 17, 17], strides = [1, 1, 1]} : vector<4x20x17xi32> to vector<4x17x17xi32>
    %c-36_i32 = arith.constant -36 : i32
    %40 = vector.broadcast %c-36_i32 : i32 to vector<4x17x17xi32>
    %41 = arith.addi %39, %40 : vector<4x17x17xi32>
    %42 = vector.extract_strided_slice %36 {offsets = [0, 1, 0], sizes = [4, 17, 17], strides = [1, 1, 1]} : vector<4x20x17xf32> to vector<4x17x17xf32>
    %43 = vector.extract_strided_slice %37 {offsets = [0, 1, 0], sizes = [4, 17, 17], strides = [1, 1, 1]} : vector<4x20x17xi32> to vector<4x17x17xi32>
    %c-20_i32 = arith.constant -20 : i32
    %44 = vector.broadcast %c-20_i32 : i32 to vector<4x17x17xi32>
    %45 = arith.addi %43, %44 : vector<4x17x17xi32>
    %46 = vector.extract_strided_slice %36 {offsets = [0, 2, 0], sizes = [4, 17, 17], strides = [1, 1, 1]} : vector<4x20x17xf32> to vector<4x17x17xf32>
    %47 = vector.extract_strided_slice %37 {offsets = [0, 2, 0], sizes = [4, 17, 17], strides = [1, 1, 1]} : vector<4x20x17xi32> to vector<4x17x17xi32>
    %c-4_i32 = arith.constant -4 : i32
    %48 = vector.broadcast %c-4_i32 : i32 to vector<4x17x17xi32>
    %49 = arith.addi %47, %48 : vector<4x17x17xi32>
    %50 = vector.extract_strided_slice %36 {offsets = [0, 3, 0], sizes = [4, 17, 17], strides = [1, 1, 1]} : vector<4x20x17xf32> to vector<4x17x17xf32>
    %51 = vector.extract_strided_slice %37 {offsets = [0, 3, 0], sizes = [4, 17, 17], strides = [1, 1, 1]} : vector<4x20x17xi32> to vector<4x17x17xi32>
    %c12_i32 = arith.constant 12 : i32
    %52 = vector.broadcast %c12_i32 : i32 to vector<4x17x17xi32>
    %53 = arith.addi %51, %52 : vector<4x17x17xi32>
    %54 = arith.cmpf oge, %38, %42 : vector<4x17x17xf32>
    %55 = arith.select %54, %38, %42 : vector<4x17x17xi1>, vector<4x17x17xf32>
    %56 = arith.select %54, %41, %45 : vector<4x17x17xi1>, vector<4x17x17xi32>
    %57 = arith.cmpf oge, %46, %50 : vector<4x17x17xf32>
    %58 = arith.select %57, %46, %50 : vector<4x17x17xi1>, vector<4x17x17xf32>
    %59 = arith.select %57, %49, %53 : vector<4x17x17xi1>, vector<4x17x17xi32>
    %60 = arith.cmpf oge, %55, %58 : vector<4x17x17xf32>
    %61 = arith.select %60, %55, %58 : vector<4x17x17xi1>, vector<4x17x17xf32>
    %62 = arith.select %60, %56, %59 : vector<4x17x17xi1>, vector<4x17x17xi32>
    %63 = tpu.iota {dimensions = array<i32: 1>} : vector<4x17x17xi32>
    %64 = tpu.iota {dimensions = array<i32: 2>} : vector<4x17x17xi32>
    %c0_2 = arith.constant 0 : index
    %c0_3 = arith.constant 0 : index
    %c0_4 = arith.constant 0 : index
    %65 = vector.load %arg2[%c0_2, %c0_3, %c0_4] : memref<4x17x17xf32, #tpu.memory_space<vmem>>, vector<4x17x17xf32>
    tpu.vector_store %arg2[%c0_2, %c0_3, %c0_4], %61 {strides = array<i32>} : memref<4x17x17xf32, #tpu.memory_space<vmem>>, vector<4x17x17xf32>,
    %c16_i32 = arith.constant 16 : i32
    %66 = vector.broadcast %c16_i32 : i32 to vector<4x17x17xi32>
    %67 = arith.muli %63, %66 : vector<4x17x17xi32>
    %68 = arith.addi %67, %64 : vector<4x17x17xi32>
    %69 = arith.addi %68, %62 : vector<4x17x17xi32>
    %c0_5 = arith.constant 0 : index
    %c0_6 = arith.constant 0 : index
    %c0_7 = arith.constant 0 : index
    %70 = vector.load %arg3[%c0_5, %c0_6, %c0_7] : memref<4x17x17xi32, #tpu.memory_space<vmem>>, vector<4x17x17xi32>
    tpu.vector_store %arg3[%c0_5, %c0_6, %c0_7], %69 {strides = array<i32>} : memref<4x17x17xi32, #tpu.memory_space<vmem>>, vector<4x17x17xi32>,
    return
  }
  func.func @transform_0(%arg0: i32) -> (i32, i32, i32) {
    %c0_i32 = arith.constant 0 : i32
    %c0_i32_0 = arith.constant 0 : i32
    %c0_i32_1 = arith.constant 0 : i32
    return %arg0, %c0_i32, %c0_i32_0 : i32, i32, i32
  }
  func.func @transform_1(%arg0: i32) -> (i32, i32, i32) {
    %c0_i32 = arith.constant 0 : i32
    %c0_i32_0 = arith.constant 0 : i32
    %c0_i32_1 = arith.constant 0 : i32
    return %arg0, %c0_i32, %c0_i32_0 : i32, i32, i32
  }
  func.func @transform_2(%arg0: i32) -> (i32, i32, i32) {
    %c0_i32 = arith.constant 0 : i32
    %c0_i32_0 = arith.constant 0 : i32
    %c0_i32_1 = arith.constant 0 : i32
    return %arg0, %c0_i32, %c0_i32_0 : i32, i32, i32
  }
}

</mosaic_0001>

<llo_original>
// kernel: tpu_custom_call.1
$region0: #{tpu_custom_call.1}
  #allocation0 [shape = 'u32[]', space=smem, size = 0x4, offset = 0x4, fixed_abs, tag = 'smem constant byte address 0x4 - core index']
  #allocation1 [shape = 'u32[144,128]{1,0:T(1,128)}', space=vmem, size = 0x12000, scoped, tag = 'internal scratch']
  %s0 = inlined_call_operand.vmem [shape: f32[8,20,24], index: 0, kind: input, shape index: {}]
  %s1 = inlined_call_operand.vmem [shape: f32[8,17,17], index: 1, kind: output, shape index: {0}]
  %s2 = inlined_call_operand.vmem [shape: s32[8,17,17], index: 2, kind: output, shape index: {1}]
  %3 = xla_tuple %s1, %s2
  %s4 = sld [smem:[#allocation0]]
  $region45: #{tpu_custom_call.1} parent=0
    _
  %s6 = ssub.s32 1, %s4
  %s7 = scalar_select 0, %s6, %s4
  loop: start=0, step=1, limit=4
  $region2: #{tpu_custom_call.1} parent=0 // loop_pre_header
    _
  $region3: #{tpu_custom_call.1} parent=0 // loop_header
    %s9 = sphi 0, %s13
    %p10 = scmp.ge.s32.totalorder %s9, 4
    %s19 = sphi 0, %s21
    %s22 = sphi 0, %s19
    %s23 = sphi 0, %s22
    %s39 = sphi 0, %s23
    %s45 = sphi 0, %s47
    %s48 = sphi 0, %s45
    %s49 = sphi 0, %s48
    %s65 = sphi 0, %s49
    %s71 = sphi 0, %s73
    %s74 = sphi 0, %s71
    %s75 = sphi 0, %s74
    %s91 = sphi 0, %s75
  $region4: #{tpu_custom_call.1} parent=0 // loop_header_branch
    %12 = sbr.rel (%p10) target = $region8
  $region5: #{tpu_custom_call.1} parent=0 // loop_body
    %s14 = ssub.s32 %s9, 1
    %s15 = ssub.s32 %s9, 2
    %s16 = sadd.s32 %s9, 1
    %s17 = ssub.s32 %s9, %s16
    %p18 = scmp.eq.s32.totalorder %s17, 0
    %s20 = sadd.s32 %s19, 1
    %s21 = scalar_select %p18, %s19, %s20
    %p24 = pneg %p18
    %p25 = scmp.eq.s32.totalorder %s9, 1
    %p26 = por %p24, %p25
    %p27 = scmp.ne.s32.totalorder %s19, %s22
    %p28 = scmp.eq.s32.totalorder %s9, 0
    %p29 = por %p27, %p28
    %p30 = scmp.ne.s32.totalorder %s19, %s22
    %p31 = scmp.eq.s32.totalorder %s14, 1
    %p32 = por %p30, %p31
    %p33 = scmp.ne.s32.totalorder %s22, %s23
    %p34 = scmp.eq.s32.totalorder %s14, 0
    %p35 = por %p33, %p34
    %p36 = scmp.ne.s32.totalorder %s22, %s23
    %p37 = scmp.eq.s32.totalorder %s15, 1
    %p38 = por %p36, %p37
    %p40 = scmp.ne.s32.totalorder %s23, %s39
    %p41 = scmp.eq.s32.totalorder %s15, 0
    %p42 = por %p40, %p41
    %s43 = ssub.s32 %s9, %s16
    %p44 = scmp.eq.s32.totalorder %s43, 0
    %s46 = sadd.s32 %s45, 1
    %s47 = scalar_select %p44, %s45, %s46
    %p50 = pneg %p44
    %p51 = scmp.eq.s32.totalorder %s9, 1
    %p52 = por %p50, %p51
    %p53 = scmp.ne.s32.totalorder %s45, %s48
    %p54 = scmp.eq.s32.totalorder %s9, 0
    %p55 = por %p53, %p54
    %p56 = scmp.ne.s32.totalorder %s45, %s48
    %p57 = scmp.eq.s32.totalorder %s14, 1
    %p58 = por %p56, %p57
    %p59 = scmp.ne.s32.totalorder %s48, %s49
    %p60 = scmp.eq.s32.totalorder %s14, 0
    %p61 = por %p59, %p60
    %p62 = scmp.ne.s32.totalorder %s48, %s49
    %p63 = scmp.eq.s32.totalorder %s15, 1
    %p64 = por %p62, %p63
    %p66 = scmp.ne.s32.totalorder %s49, %s65
    %p67 = scmp.eq.s32.totalorder %s15, 0
    %p68 = por %p66, %p67
    %s69 = ssub.s32 %s9, %s16
    %p70 = scmp.eq.s32.totalorder %s69, 0
    %s72 = sadd.s32 %s71, 1
    %s73 = scalar_select %p70, %s71, %s72
    %p76 = pneg %p70
    %p77 = scmp.eq.s32.totalorder %s9, 1
    %p78 = por %p76, %p77
    %p79 = scmp.ne.s32.totalorder %s71, %s74
    %p80 = scmp.eq.s32.totalorder %s9, 0
    %p81 = por %p79, %p80
    %p82 = scmp.ne.s32.totalorder %s71, %s74
    %p83 = scmp.eq.s32.totalorder %s14, 1
    %p84 = por %p82, %p83
    %p85 = scmp.ne.s32.totalorder %s74, %s75
    %p86 = scmp.eq.s32.totalorder %s14, 0
    %p87 = por %p85, %p86
    %p88 = scmp.ne.s32.totalorder %s74, %s75
    %p89 = scmp.eq.s32.totalorder %s15, 1
    %p90 = por %p88, %p89
    %p92 = scmp.ne.s32.totalorder %s75, %s91
    %p93 = scmp.eq.s32.totalorder %s15, 0
    %p94 = por %p92, %p93
    %p95 = scmp.le.s32.totalorder 1, %s9
    %p96 = scmp.lt.s32.totalorder %s9, 3
    %p97 = pnand %p95, %p96
    %p98 = pneg %p97
    // Predicated region
    $region9: #{tpu_custom_call.1} parent=5 // pred_check
      _
    $region10: #{tpu_custom_call.1} parent=5 // pred_check_branch
      %100 = sbr.rel (%p97) target = $region12
    $region11: #{tpu_custom_call.1} parent=5 // pred_region
      %s101 = ssub.s32 %s9, 1
    $region12: #{tpu_custom_call.1} parent=5 // pred_fallthru
      _
    %p102 = scmp.lt.s32.totalorder %s9, 2
    // Predicated region
    $region13: #{tpu_custom_call.1} parent=5 // pred_check
      %p103 = pneg %p102
    $region14: #{tpu_custom_call.1} parent=5 // pred_check_branch
      %105 = sbr.rel (%p103) target = $region16
    $region15: #{tpu_custom_call.1} parent=5 // pred_region
      // Predicated region
      $region17: #{tpu_custom_call.1} parent=15 // pred_check
        %p106 = pneg %p29
      $region18: #{tpu_custom_call.1} parent=15 // pred_check_branch
        %108 = sbr.rel (%p106) target = $region20
      $region19: #{tpu_custom_call.1} parent=15 // pred_region
        %s109 = smul.u32 4, %s9
        %p110 = scmp.lt.s32.totalorder %s109, 7
        %s111 = scalar_select %p110, %s109, 7
        %s112 = smul.addr %s111, 3
        %s113 = smul.addr %s112, 8
        %s114 = scalar_lea.vmem %s0, %s113
        %s115 = smul.u32 4, %s9
      $region20: #{tpu_custom_call.1} parent=15 // pred_fallthru
        _
    $region16: #{tpu_custom_call.1} parent=5 // pred_fallthru
      _
    %p116 = scmp.le.s32.totalorder 1, %s9
    %p117 = scmp.lt.s32.totalorder %s9, 3
    %p118 = pnand %p116, %p117
    %p119 = pneg %p118
    // Predicated region
    $region21: #{tpu_custom_call.1} parent=5 // pred_check
      _
    $region22: #{tpu_custom_call.1} parent=5 // pred_check_branch
      %121 = sbr.rel (%p118) target = $region24
    $region23: #{tpu_custom_call.1} parent=5 // pred_region
      %s122 = ssub.s32 %s9, 1
      %s123 = smul.u32 4, %s14
      %p124 = scmp.lt.s32.totalorder %s123, 7
      %s125 = scalar_select %p124, %s123, 7
      %s126 = smul.addr %s125, 3
      %s127 = smul.addr %s126, 8
      %s128 = scalar_lea.vmem %s0, %s127
      %p129 = pneg %p35
      %p130 = pneg %p32
      %p131 = pneg %p61
      %p132 = pneg %p58
      %s133 = smul.u32 4, %s14
      %p134 = scmp.lt.s32.totalorder %s133, 7
      %s135 = scalar_select %p134, %s133, 7
      %s136 = smul.addr %s135, 3
      %s137 = smul.addr %s136, 8
      %s138 = scalar_lea.vmem %s1, %s137
      %p139 = pneg %p87
      %p140 = pneg %p84
      %s141 = smul.u32 4, %s14
      %p142 = scmp.lt.s32.totalorder %s141, 7
      %s143 = scalar_select %p142, %s141, 7
      %s144 = smul.addr %s143, 3
      %s145 = smul.addr %s144, 8
      %s146 = scalar_lea.vmem %s2, %s145
      %s147 = smul.u32 4, %s14
      %p148 = scmp.lt.s32.totalorder %s147, 7
      %s149 = scalar_select %p148, %s147, 7
      %s150 = smul.addr %s149, 3
      %s151 = smul.addr %s150, 8
      %s152 = scalar_lea.vmem %s0, %s151
      %s153 = smul.u32 4, %s14
      %s154 = smul.u32 4, %s14
      %p155 = scmp.lt.s32.totalorder %s154, 7
      %s156 = scalar_select %p155, %s154, 7
      %s157 = smul.addr %s156, 3
      %s158 = smul.addr %s157, 8
      %s159 = scalar_lea.vmem %s1, %s158
      %s160 = smul.u32 4, %s14
      %s161 = smul.u32 4, %s14
      %p162 = scmp.lt.s32.totalorder %s161, 7
      %s163 = scalar_select %p162, %s161, 7
      %s164 = smul.addr %s163, 3
      %s165 = smul.addr %s164, 8
      %s166 = scalar_lea.vmem %s2, %s165
      %s167 = smul.u32 4, %s14
      %v168 = vld [vmem:[%s152] sm:$0xff]
      %v169 = vld [vmem:[%s152 + $0x8] sm:$0xff]
      %v170 = vld [vmem:[%s152 + $0x10] sm:$0xf]
      %v171 = vld [vmem:[%s152 + $0x18] sm:$0xff]
      %v172 = vld [vmem:[%s152 + $0x20] sm:$0xff]
      %v173 = vld [vmem:[%s152 + $0x28] sm:$0xf]
      %v174 = vld [vmem:[%s152 + $0x30] sm:$0xff]
      %v175 = vld [vmem:[%s152 + $0x38] sm:$0xff]
      %v176 = vld [vmem:[%s152 + $0x40] sm:$0xf]
      %v177 = vld [vmem:[%s152 + $0x48] sm:$0xff]
      %v178 = vld [vmem:[%s152 + $0x50] sm:$0xff]
      %v179 = vld [vmem:[%s152 + $0x58] sm:$0xf]
      %192 = vrot.lane.b32.xlu0 %v168, 127
      %v193 = vpop.permute.xlu0 %192
      %194 = vrot.lane.b32.xlu0 %v169, 127
      %v195 = vpop.permute.xlu0 %194
      %196 = vrot.lane.b32.xlu0 %v170, 127
      %v197 = vpop.permute.xlu0 %196
      %198 = vrot.lane.b32.xlu0 %v171, 127
      %v199 = vpop.permute.xlu0 %198
      %200 = vrot.lane.b32.xlu0 %v172, 127
      %v201 = vpop.permute.xlu0 %200
      %202 = vrot.lane.b32.xlu0 %v173, 127
      %v203 = vpop.permute.xlu0 %202
      %204 = vrot.lane.b32.xlu0 %v174, 127
      %v205 = vpop.permute.xlu0 %204
      %206 = vrot.lane.b32.xlu0 %v175, 127
      %v207 = vpop.permute.xlu0 %206
      %208 = vrot.lane.b32.xlu0 %v176, 127
      %v209 = vpop.permute.xlu0 %208
      %210 = vrot.lane.b32.xlu0 %v177, 127
      %v211 = vpop.permute.xlu0 %210
      %212 = vrot.lane.b32.xlu0 %v178, 127
      %v213 = vpop.permute.xlu0 %212
      %214 = vrot.lane.b32.xlu0 %v179, 127
      %v215 = vpop.permute.xlu0 %214
      %vm228 = vcmp.ge.f32.partialorder %v168, %v193
      %vm229 = vcmp.ge.f32.partialorder %v169, %v195
      %vm230 = vcmp.ge.f32.partialorder %v170, %v197
      %vm231 = vcmp.ge.f32.partialorder %v171, %v199
      %vm232 = vcmp.ge.f32.partialorder %v172, %v201
      %vm233 = vcmp.ge.f32.partialorder %v173, %v203
      %vm234 = vcmp.ge.f32.partialorder %v174, %v205
      %vm235 = vcmp.ge.f32.partialorder %v175, %v207
      %vm236 = vcmp.ge.f32.partialorder %v176, %v209
      %vm237 = vcmp.ge.f32.partialorder %v177, %v211
      %vm238 = vcmp.ge.f32.partialorder %v178, %v213
      %vm239 = vcmp.ge.f32.partialorder %v179, %v215
      %v240 = vsel %vm228, %v168, %v193
      %v241 = vsel %vm229, %v169, %v195
      %v242 = vsel %vm230, %v170, %v197
      %v243 = vsel %vm231, %v171, %v199
      %v244 = vsel %vm232, %v172, %v201
      %v245 = vsel %vm233, %v173, %v203
      %v246 = vsel %vm234, %v174, %v205
      %v247 = vsel %vm235, %v175, %v207
      %v248 = vsel %vm236, %v176, %v209
      %v249 = vsel %vm237, %v177, %v211
      %v250 = vsel %vm238, %v178, %v213
      %v251 = vsel %vm239, %v179, %v215
      %v252 = vsel %vm228, 0, 1
      %v253 = vsel %vm229, 0, 1
      %v254 = vsel %vm230, 0, 1
      %v255 = vsel %vm231, 0, 1
      %v256 = vsel %vm232, 0, 1
      %v257 = vsel %vm233, 0, 1
      %v258 = vsel %vm234, 0, 1
      %v259 = vsel %vm235, 0, 1
      %v260 = vsel %vm236, 0, 1
      %v261 = vsel %vm237, 0, 1
      %v262 = vsel %vm238, 0, 1
      %v263 = vsel %vm239, 0, 1
      %v264 = vsel %vm228, 2, 3
      %v265 = vsel %vm229, 2, 3
      %v266 = vsel %vm230, 2, 3
      %v267 = vsel %vm231, 2, 3
      %v268 = vsel %vm232, 2, 3
      %v269 = vsel %vm233, 2, 3
      %v270 = vsel %vm234, 2, 3
      %v271 = vsel %vm235, 2, 3
      %v272 = vsel %vm236, 2, 3
      %v273 = vsel %vm237, 2, 3
      %v274 = vsel %vm238, 2, 3
      %v275 = vsel %vm239, 2, 3
      %v276 = vsel %vm228, 4, 5
      %v277 = vsel %vm229, 4, 5
      %v278 = vsel %vm230, 4, 5
      %v279 = vsel %vm231, 4, 5
      %v280 = vsel %vm232, 4, 5
      %v281 = vsel %vm233, 4, 5
      %v282 = vsel %vm234, 4, 5
      %v283 = vsel %vm235, 4, 5
      %v284 = vsel %vm236, 4, 5
      %v285 = vsel %vm237, 4, 5
      %v286 = vsel %vm238, 4, 5
      %v287 = vsel %vm239, 4, 5
      %v288 = vsel %vm228, 6, 7
      %v289 = vsel %vm229, 6, 7
      %v290 = vsel %vm230, 6, 7
      %v291 = vsel %vm231, 6, 7
      %v292 = vsel %vm232, 6, 7
      %v293 = vsel %vm233, 6, 7
      %v294 = vsel %vm234, 6, 7
      %v295 = vsel %vm235, 6, 7
      %v296 = vsel %vm236, 6, 7
      %v297 = vsel %vm237, 6, 7
      %v298 = vsel %vm238, 6, 7
      %v299 = vsel %vm239, 6, 7
      %312 = vrot.lane.b32.xlu0 %v240, 126
      %v313 = vpop.permute.xlu0 %312
      %314 = vrot.lane.b32.xlu0 %v241, 126
      %v315 = vpop.permute.xlu0 %314
      %316 = vrot.lane.b32.xlu0 %v242, 126
      %v317 = vpop.permute.xlu0 %316
      %318 = vrot.lane.b32.xlu0 %v243, 126
      %v319 = vpop.permute.xlu0 %318
      %320 = vrot.lane.b32.xlu0 %v244, 126
      %v321 = vpop.permute.xlu0 %320
      %322 = vrot.lane.b32.xlu0 %v245, 126
      %v323 = vpop.permute.xlu0 %322
      %324 = vrot.lane.b32.xlu0 %v246, 126
      %v325 = vpop.permute.xlu0 %324
      %326 = vrot.lane.b32.xlu0 %v247, 126
      %v327 = vpop.permute.xlu0 %326
      %328 = vrot.lane.b32.xlu0 %v248, 126
      %v329 = vpop.permute.xlu0 %328
      %330 = vrot.lane.b32.xlu0 %v249, 126
      %v331 = vpop.permute.xlu0 %330
      %332 = vrot.lane.b32.xlu0 %v250, 126
      %v333 = vpop.permute.xlu0 %332
      %334 = vrot.lane.b32.xlu0 %v251, 126
      %v335 = vpop.permute.xlu0 %334
      %vm348 = vcmp.ge.f32.partialorder %v240, %v313
      %vm349 = vcmp.ge.f32.partialorder %v241, %v315
      %vm350 = vcmp.ge.f32.partialorder %v242, %v317
      %vm351 = vcmp.ge.f32.partialorder %v243, %v319
      %vm352 = vcmp.ge.f32.partialorder %v244, %v321
      %vm353 = vcmp.ge.f32.partialorder %v245, %v323
      %vm354 = vcmp.ge.f32.partialorder %v246, %v325
      %vm355 = vcmp.ge.f32.partialorder %v247, %v327
      %vm356 = vcmp.ge.f32.partialorder %v248, %v329
      %vm357 = vcmp.ge.f32.partialorder %v249, %v331
      %vm358 = vcmp.ge.f32.partialorder %v250, %v333
      %vm359 = vcmp.ge.f32.partialorder %v251, %v335
      %v360 = vsel %vm348, %v240, %v313
      %v361 = vsel %vm349, %v241, %v315
      %v362 = vsel %vm350, %v242, %v317
      %v363 = vsel %vm351, %v243, %v319
      %v364 = vsel %vm352, %v244, %v321
      %v365 = vsel %vm353, %v245, %v323
      %v366 = vsel %vm354, %v246, %v325
      %v367 = vsel %vm355, %v247, %v327
      %v368 = vsel %vm356, %v248, %v329
      %v369 = vsel %vm357, %v249, %v331
      %v370 = vsel %vm358, %v250, %v333
      %v371 = vsel %vm359, %v251, %v335
      %372 = vrot.lane.b32.xlu0 %v264, 126
      %v373 = vpop.permute.xlu0 %372
      %374 = vrot.lane.b32.xlu0 %v265, 126
      %v375 = vpop.permute.xlu0 %374
      %376 = vrot.lane.b32.xlu0 %v266, 126
      %v377 = vpop.permute.xlu0 %376
      %378 = vrot.lane.b32.xlu0 %v267, 126
      %v379 = vpop.permute.xlu0 %378
      %380 = vrot.lane.b32.xlu0 %v268, 126
      %v381 = vpop.permute.xlu0 %380
      %382 = vrot.lane.b32.xlu0 %v269, 126
      %v383 = vpop.permute.xlu0 %382
      %384 = vrot.lane.b32.xlu0 %v270, 126
      %v385 = vpop.permute.xlu0 %384
      %386 = vrot.lane.b32.xlu0 %v271, 126
      %v387 = vpop.permute.xlu0 %386
      %388 = vrot.lane.b32.xlu0 %v272, 126
      %v389 = vpop.permute.xlu0 %388
      %390 = vrot.lane.b32.xlu0 %v273, 126
      %v391 = vpop.permute.xlu0 %390
      %392 = vrot.lane.b32.xlu0 %v274, 126
      %v393 = vpop.permute.xlu0 %392
      %394 = vrot.lane.b32.xlu0 %v275, 126
      %v395 = vpop.permute.xlu0 %394
      %v396 = vsel %vm348, %v252, %v373
      %v397 = vsel %vm349, %v253, %v375
      %v398 = vsel %vm350, %v254, %v377
      %v399 = vsel %vm351, %v255, %v379
      %v400 = vsel %vm352, %v256, %v381
      %v401 = vsel %vm353, %v257, %v383
      %v402 = vsel %vm354, %v258, %v385
      %v403 = vsel %vm355, %v259, %v387
      %v404 = vsel %vm356, %v260, %v389
      %v405 = vsel %vm357, %v261, %v391
      %v406 = vsel %vm358, %v262, %v393
      %v407 = vsel %vm359, %v263, %v395
      %408 = vrot.lane.b32.xlu0 %v288, 126
      %v409 = vpop.permute.xlu0 %408
      %410 = vrot.lane.b32.xlu0 %v289, 126
      %v411 = vpop.permute.xlu0 %410
      %412 = vrot.lane.b32.xlu0 %v290, 126
      %v413 = vpop.permute.xlu0 %412
      %414 = vrot.lane.b32.xlu0 %v291, 126
      %v415 = vpop.permute.xlu0 %414
      %416 = vrot.lane.b32.xlu0 %v292, 126
      %v417 = vpop.permute.xlu0 %416
      %418 = vrot.lane.b32.xlu0 %v293, 126
      %v419 = vpop.permute.xlu0 %418
      %420 = vrot.lane.b32.xlu0 %v294, 126
      %v421 = vpop.permute.xlu0 %420
      %422 = vrot.lane.b32.xlu0 %v295, 126
      %v423 = vpop.permute.xlu0 %422
      %424 = vrot.lane.b32.xlu0 %v296, 126
      %v425 = vpop.permute.xlu0 %424
      %426 = vrot.lane.b32.xlu0 %v297, 126
      %v427 = vpop.permute.xlu0 %426
      %428 = vrot.lane.b32.xlu0 %v298, 126
      %v429 = vpop.permute.xlu0 %428
      %430 = vrot.lane.b32.xlu0 %v299, 126
      %v431 = vpop.permute.xlu0 %430
      %v432 = vsel %vm348, %v276, %v409
      %v433 = vsel %vm349, %v277, %v411
      %v434 = vsel %vm350, %v278, %v413
      %v435 = vsel %vm351, %v279, %v415
      %v436 = vsel %vm352, %v280, %v417
      %v437 = vsel %vm353, %v281, %v419
      %v438 = vsel %vm354, %v282, %v421
      %v439 = vsel %vm355, %v283, %v423
      %v440 = vsel %vm356, %v284, %v425
      %v441 = vsel %vm357, %v285, %v427
      %v442 = vsel %vm358, %v286, %v429
      %v443 = vsel %vm359, %v287, %v431
      %456 = vrot.lane.b32.xlu0 %v360, 124
      %v457 = vpop.permute.xlu0 %456
      %458 = vrot.lane.b32.xlu0 %v361, 124
      %v459 = vpop.permute.xlu0 %458
      %460 = vrot.lane.b32.xlu0 %v362, 124
      %v461 = vpop.permute.xlu0 %460
      %462 = vrot.lane.b32.xlu0 %v363, 124
      %v463 = vpop.permute.xlu0 %462
      %464 = vrot.lane.b32.xlu0 %v364, 124
      %v465 = vpop.permute.xlu0 %464
      %466 = vrot.lane.b32.xlu0 %v365, 124
      %v467 = vpop.permute.xlu0 %466
      %468 = vrot.lane.b32.xlu0 %v366, 124
      %v469 = vpop.permute.xlu0 %468
      %470 = vrot.lane.b32.xlu0 %v367, 124
      %v471 = vpop.permute.xlu0 %470
      %472 = vrot.lane.b32.xlu0 %v368, 124
      %v473 = vpop.permute.xlu0 %472
      %474 = vrot.lane.b32.xlu0 %v369, 124
      %v475 = vpop.permute.xlu0 %474
      %476 = vrot.lane.b32.xlu0 %v370, 124
      %v477 = vpop.permute.xlu0 %476
      %478 = vrot.lane.b32.xlu0 %v371, 124
      %v479 = vpop.permute.xlu0 %478
      %vm492 = vcmp.ge.f32.partialorder %v360, %v457
      %vm493 = vcmp.ge.f32.partialorder %v361, %v459
      %vm494 = vcmp.ge.f32.partialorder %v362, %v461
      %vm495 = vcmp.ge.f32.partialorder %v363, %v463
      %vm496 = vcmp.ge.f32.partialorder %v364, %v465
      %vm497 = vcmp.ge.f32.partialorder %v365, %v467
      %vm498 = vcmp.ge.f32.partialorder %v366, %v469
      %vm499 = vcmp.ge.f32.partialorder %v367, %v471
      %vm500 = vcmp.ge.f32.partialorder %v368, %v473
      %vm501 = vcmp.ge.f32.partialorder %v369, %v475
      %vm502 = vcmp.ge.f32.partialorder %v370, %v477
      %vm503 = vcmp.ge.f32.partialorder %v371, %v479
      %v504 = vsel %vm492, %v360, %v457
      %v505 = vsel %vm493, %v361, %v459
      %v506 = vsel %vm494, %v362, %v461
      %v507 = vsel %vm495, %v363, %v463
      %v508 = vsel %vm496, %v364, %v465
      %v509 = vsel %vm497, %v365, %v467
      %v510 = vsel %vm498, %v366, %v469
      %v511 = vsel %vm499, %v367, %v471
      %v512 = vsel %vm500, %v368, %v473
      %v513 = vsel %vm501, %v369, %v475
      %v514 = vsel %vm502, %v370, %v477
      %v515 = vsel %vm503, %v371, %v479
      %516 = vrot.lane.b32.xlu0 %v432, 124
      %v517 = vpop.permute.xlu0 %516
      %518 = vrot.lane.b32.xlu0 %v433, 124
      %v519 = vpop.permute.xlu0 %518
      %520 = vrot.lane.b32.xlu0 %v434, 124
      %v521 = vpop.permute.xlu0 %520
      %522 = vrot.lane.b32.xlu0 %v435, 124
      %v523 = vpop.permute.xlu0 %522
      %524 = vrot.lane.b32.xlu0 %v436, 124
      %v525 = vpop.permute.xlu0 %524
      %526 = vrot.lane.b32.xlu0 %v437, 124
      %v527 = vpop.permute.xlu0 %526
      %528 = vrot.lane.b32.xlu0 %v438, 124
      %v529 = vpop.permute.xlu0 %528
      %530 = vrot.lane.b32.xlu0 %v439, 124
      %v531 = vpop.permute.xlu0 %530
      %532 = vrot.lane.b32.xlu0 %v440, 124
      %v533 = vpop.permute.xlu0 %532
      %534 = vrot.lane.b32.xlu0 %v441, 124
      %v535 = vpop.permute.xlu0 %534
      %536 = vrot.lane.b32.xlu0 %v442, 124
      %v537 = vpop.permute.xlu0 %536
      %538 = vrot.lane.b32.xlu0 %v443, 124
      %v539 = vpop.permute.xlu0 %538
      %v540 = vsel %vm492, %v396, %v517
      %v541 = vsel %vm493, %v397, %v519
      %v542 = vsel %vm494, %v398, %v521
      %v543 = vsel %vm495, %v399, %v523
      %v544 = vsel %vm496, %v400, %v525
      %v545 = vsel %vm497, %v401, %v527
      %v546 = vsel %vm498, %v402, %v529
      %v547 = vsel %vm499, %v403, %v531
      %v548 = vsel %vm500, %v404, %v533
      %v549 = vsel %vm501, %v405, %v535
      %v550 = vsel %vm502, %v406, %v537
      %v551 = vsel %vm503, %v407, %v539
      %v552 = vadd.s32 %v540, 4294967260
      %v553 = vadd.s32 %v541, 4294967260
      %v554 = vadd.s32 %v542, 4294967260
      %v555 = vadd.s32 %v543, 4294967260
      %v556 = vadd.s32 %v544, 4294967260
      %v557 = vadd.s32 %v545, 4294967260
      %v558 = vadd.s32 %v546, 4294967260
      %v559 = vadd.s32 %v547, 4294967260
      %v560 = vadd.s32 %v548, 4294967260
      %v561 = vadd.s32 %v549, 4294967260
      %v562 = vadd.s32 %v550, 4294967260
      %v563 = vadd.s32 %v551, 4294967260
      %v564 = vadd.s32 %v540, 4294967276
      %v565 = vadd.s32 %v541, 4294967276
      %v566 = vadd.s32 %v542, 4294967276
      %v567 = vadd.s32 %v543, 4294967276
      %v568 = vadd.s32 %v544, 4294967276
      %v569 = vadd.s32 %v545, 4294967276
      %v570 = vadd.s32 %v546, 4294967276
      %v571 = vadd.s32 %v547, 4294967276
      %v572 = vadd.s32 %v548, 4294967276
      %v573 = vadd.s32 %v549, 4294967276
      %v574 = vadd.s32 %v550, 4294967276
      %v575 = vadd.s32 %v551, 4294967276
      %v576 = vadd.s32 %v540, 4294967292
      %v577 = vadd.s32 %v541, 4294967292
      %v578 = vadd.s32 %v542, 4294967292
      %v579 = vadd.s32 %v543, 4294967292
      %v580 = vadd.s32 %v544, 4294967292
      %v581 = vadd.s32 %v545, 4294967292
      %v582 = vadd.s32 %v546, 4294967292
      %v583 = vadd.s32 %v547, 4294967292
      %v584 = vadd.s32 %v548, 4294967292
      %v585 = vadd.s32 %v549, 4294967292
      %v586 = vadd.s32 %v550, 4294967292
      %v587 = vadd.s32 %v551, 4294967292
      %v588 = vadd.s32 %v540, 12
      %v589 = vadd.s32 %v541, 12
      %v590 = vadd.s32 %v542, 12
      %v591 = vadd.s32 %v543, 12
      %v592 = vadd.s32 %v544, 12
      %v593 = vadd.s32 %v545, 12
      %v594 = vadd.s32 %v546, 12
      %v595 = vadd.s32 %v547, 12
      %v596 = vadd.s32 %v548, 12
      %v597 = vadd.s32 %v549, 12
      %v598 = vadd.s32 %v550, 12
      %v599 = vadd.s32 %v551, 12
      %vm612 = vcmask 1046528
      %v613 = vrot.slane %v504, 1
      %v614 = vrot.slane %v505, 1
      %v615 = vsel %vm612, %v613, %v614
      %v616 = vrot.slane %v506, 1
      %v617 = vsel %vm612, %v614, %v616
      %v618 = vrot.slane %v507, 1
      %v619 = vrot.slane %v508, 1
      %v620 = vsel %vm612, %v618, %v619
      %v621 = vrot.slane %v509, 1
      %v622 = vsel %vm612, %v619, %v621
      %v623 = vrot.slane %v510, 1
      %v624 = vrot.slane %v511, 1
      %v625 = vsel %vm612, %v623, %v624
      %v626 = vrot.slane %v512, 1
      %v627 = vsel %vm612, %v624, %v626
      %v628 = vrot.slane %v513, 1
      %v629 = vrot.slane %v514, 1
      %v630 = vsel %vm612, %v628, %v629
      %v631 = vrot.slane %v515, 1
      %v632 = vsel %vm612, %v629, %v631
      %vm645 = vcmp.ge.f32.partialorder %v504, %v615
      %vm646 = vcmp.ge.f32.partialorder %v505, %v617
      %vm647 = vcmp.ge.f32.partialorder %v506, %v616
      %vm648 = vcmp.ge.f32.partialorder %v507, %v620
      %vm649 = vcmp.ge.f32.partialorder %v508, %v622
      %vm650 = vcmp.ge.f32.partialorder %v509, %v621
      %vm651 = vcmp.ge.f32.partialorder %v510, %v625
      %vm652 = vcmp.ge.f32.partialorder %v511, %v627
      %vm653 = vcmp.ge.f32.partialorder %v512, %v626
      %vm654 = vcmp.ge.f32.partialorder %v513, %v630
      %vm655 = vcmp.ge.f32.partialorder %v514, %v632
      %vm656 = vcmp.ge.f32.partialorder %v515, %v631
      %v657 = vsel %vm645, %v504, %v615
      %v658 = vsel %vm646, %v505, %v617
      %v659 = vsel %vm647, %v506, %v616
      %v660 = vsel %vm648, %v507, %v620
      %v661 = vsel %vm649, %v508, %v622
      %v662 = vsel %vm650, %v509, %v621
      %v663 = vsel %vm651, %v510, %v625
      %v664 = vsel %vm652, %v511, %v627
      %v665 = vsel %vm653, %v512, %v626
      %v666 = vsel %vm654, %v513, %v630
      %v667 = vsel %vm655, %v514, %v632
      %v668 = vsel %vm656, %v515, %v631
      %v669 = vrot.slane %v564, 1
      %v670 = vrot.slane %v565, 1
      %v671 = vsel %vm612, %v669, %v670
      %v672 = vrot.slane %v566, 1
      %v673 = vsel %vm612, %v670, %v672
      %v674 = vrot.slane %v567, 1
      %v675 = vrot.slane %v568, 1
      %v676 = vsel %vm612, %v674, %v675
      %v677 = vrot.slane %v569, 1
      %v678 = vsel %vm612, %v675, %v677
      %v679 = vrot.slane %v570, 1
      %v680 = vrot.slane %v571, 1
      %v681 = vsel %vm612, %v679, %v680
      %v682 = vrot.slane %v572, 1
      %v683 = vsel %vm612, %v680, %v682
      %v684 = vrot.slane %v573, 1
      %v685 = vrot.slane %v574, 1
      %v686 = vsel %vm612, %v684, %v685
      %v687 = vrot.slane %v575, 1
      %v688 = vsel %vm612, %v685, %v687
      %v689 = vsel %vm645, %v552, %v671
      %v690 = vsel %vm646, %v553, %v673
      %v691 = vsel %vm647, %v554, %v672
      %v692 = vsel %vm648, %v555, %v676
      %v693 = vsel %vm649, %v556, %v678
      %v694 = vsel %vm650, %v557, %v677
      %v695 = vsel %vm651, %v558, %v681
      %v696 = vsel %vm652, %v559, %v683
      %v697 = vsel %vm653, %v560, %v682
      %v698 = vsel %vm654, %v561, %v686
      %v699 = vsel %vm655, %v562, %v688
      %v700 = vsel %vm656, %v563, %v687
      %v701 = vrot.slane %v588, 1
      %v702 = vrot.slane %v589, 1
      %v703 = vsel %vm612, %v701, %v702
      %v704 = vrot.slane %v590, 1
      %v705 = vsel %vm612, %v702, %v704
      %v706 = vrot.slane %v591, 1
      %v707 = vrot.slane %v592, 1
      %v708 = vsel %vm612, %v706, %v707
      %v709 = vrot.slane %v593, 1
      %v710 = vsel %vm612, %v707, %v709
      %v711 = vrot.slane %v594, 1
      %v712 = vrot.slane %v595, 1
      %v713 = vsel %vm612, %v711, %v712
      %v714 = vrot.slane %v596, 1
      %v715 = vsel %vm612, %v712, %v714
      %v716 = vrot.slane %v597, 1
      %v717 = vrot.slane %v598, 1
      %v718 = vsel %vm612, %v716, %v717
      %v719 = vrot.slane %v599, 1
      %v720 = vsel %vm612, %v717, %v719
      %v721 = vsel %vm645, %v576, %v703
      %v722 = vsel %vm646, %v577, %v705
      %v723 = vsel %vm647, %v578, %v704
      %v724 = vsel %vm648, %v579, %v708
      %v725 = vsel %vm649, %v580, %v710
      %v726 = vsel %vm650, %v581, %v709
      %v727 = vsel %vm651, %v582, %v713
      %v728 = vsel %vm652, %v583, %v715
      %v729 = vsel %vm653, %v584, %v714
      %v730 = vsel %vm654, %v585, %v718
      %v731 = vsel %vm655, %v586, %v720
      %v732 = vsel %vm656, %v587, %v719
      %vm745 = vcmask 1045504
      %v746 = vrot.slane %v657, 2
      %v747 = vrot.slane %v658, 2
      %v748 = vsel %vm745, %v746, %v747
      %v749 = vrot.slane %v659, 2
      %v750 = vsel %vm745, %v747, %v749
      %v751 = vrot.slane %v660, 2
      %v752 = vrot.slane %v661, 2
      %v753 = vsel %vm745, %v751, %v752
      %v754 = vrot.slane %v662, 2
      %v755 = vsel %vm745, %v752, %v754
      %v756 = vrot.slane %v663, 2
      %v757 = vrot.slane %v664, 2
      %v758 = vsel %vm745, %v756, %v757
      %v759 = vrot.slane %v665, 2
      %v760 = vsel %vm745, %v757, %v759
      %v761 = vrot.slane %v666, 2
      %v762 = vrot.slane %v667, 2
      %v763 = vsel %vm745, %v761, %v762
      %v764 = vrot.slane %v668, 2
      %v765 = vsel %vm745, %v762, %v764
      %vm778 = vcmp.ge.f32.partialorder %v657, %v748
      %vm779 = vcmp.ge.f32.partialorder %v658, %v750
      %vm780 = vcmp.ge.f32.partialorder %v659, %v749
      %vm781 = vcmp.ge.f32.partialorder %v660, %v753
      %vm782 = vcmp.ge.f32.partialorder %v661, %v755
      %vm783 = vcmp.ge.f32.partialorder %v662, %v754
      %vm784 = vcmp.ge.f32.partialorder %v663, %v758
      %vm785 = vcmp.ge.f32.partialorder %v664, %v760
      %vm786 = vcmp.ge.f32.partialorder %v665, %v759
      %vm787 = vcmp.ge.f32.partialorder %v666, %v763
      %vm788 = vcmp.ge.f32.partialorder %v667, %v765
      %vm789 = vcmp.ge.f32.partialorder %v668, %v764
      %v790 = vsel %vm778, %v657, %v748
      %v791 = vsel %vm779, %v658, %v750
      %v792 = vsel %vm780, %v659, %v749
      %v793 = vsel %vm781, %v660, %v753
      %v794 = vsel %vm782, %v661, %v755
      %v795 = vsel %vm783, %v662, %v754
      %v796 = vsel %vm784, %v663, %v758
      %v797 = vsel %vm785, %v664, %v760
      %v798 = vsel %vm786, %v665, %v759
      %v799 = vsel %vm787, %v666, %v763
      %v800 = vsel %vm788, %v667, %v765
      %v801 = vsel %vm789, %v668, %v764
      %v802 = vrot.slane %v721, 2
      %v803 = vrot.slane %v722, 2
      %v804 = vsel %vm745, %v802, %v803
      %v805 = vrot.slane %v723, 2
      %v806 = vsel %vm745, %v803, %v805
      %v807 = vrot.slane %v724, 2
      %v808 = vrot.slane %v725, 2
      %v809 = vsel %vm745, %v807, %v808
      %v810 = vrot.slane %v726, 2
      %v811 = vsel %vm745, %v808, %v810
      %v812 = vrot.slane %v727, 2
      %v813 = vrot.slane %v728, 2
      %v814 = vsel %vm745, %v812, %v813
      %v815 = vrot.slane %v729, 2
      %v816 = vsel %vm745, %v813, %v815
      %v817 = vrot.slane %v730, 2
      %v818 = vrot.slane %v731, 2
      %v819 = vsel %vm745, %v817, %v818
      %v820 = vrot.slane %v732, 2
      %v821 = vsel %vm745, %v818, %v820
      %v822 = vsel %vm778, %v689, %v804
      %v823 = vsel %vm779, %v690, %v806
      %v824 = vsel %vm780, %v691, %v805
      %v825 = vsel %vm781, %v692, %v809
      %v826 = vsel %vm782, %v693, %v811
      %v827 = vsel %vm783, %v694, %v810
      %v828 = vsel %vm784, %v695, %v814
      %v829 = vsel %vm785, %v696, %v816
      %v830 = vsel %vm786, %v697, %v815
      %v831 = vsel %vm787, %v698, %v819
      %v832 = vsel %vm788, %v699, %v821
      %v833 = vsel %vm789, %v700, %v820
      %v834 = vlaneseq
      %v835 = vshrl.u32 %v834, 7
      %v836 = vadd.s32 %v835, 8
      %v837 = vadd.s32 %v835, 16
      %v838 = vlaneseq
      %v839 = vand.u32 %v838, 127
      %vm840 = vcmask 138240
      %841 = vst.msk [vmem:[%s159] sm:$0xff] %vm840, %v790
      %842 = vst.msk [vmem:[%s159 + $0x8] sm:$0xff] %vm840, %v791
      %vm843 = vcmask 131072
      %844 = vst.msk [vmem:[%s159 + $0x10] sm:$0x1] %vm843, %v792
      %845 = vst.msk [vmem:[%s159 + $0x18] sm:$0xff] %vm840, %v793
      %846 = vst.msk [vmem:[%s159 + $0x20] sm:$0xff] %vm840, %v794
      %847 = vst.msk [vmem:[%s159 + $0x28] sm:$0x1] %vm843, %v795
      %848 = vst.msk [vmem:[%s159 + $0x30] sm:$0xff] %vm840, %v796
      %849 = vst.msk [vmem:[%s159 + $0x38] sm:$0xff] %vm840, %v797
      %850 = vst.msk [vmem:[%s159 + $0x40] sm:$0x1] %vm843, %v798
      %851 = vst.msk [vmem:[%s159 + $0x48] sm:$0xff] %vm840, %v799
      %852 = vst.msk [vmem:[%s159 + $0x50] sm:$0xff] %vm840, %v800
      %853 = vst.msk [vmem:[%s159 + $0x58] sm:$0x1] %vm843, %v801
      %v854 = vmul.u32 %v835, 16
      %v855 = vmul.u32 %v836, 16
      %v856 = vmul.u32 %v837, 16
      %v857 = vadd.s32 %v854, %v839
      %v858 = vadd.s32 %v855, %v839
      %v859 = vadd.s32 %v856, %v839
      %v860 = vadd.s32 %v857, %v822
      %v861 = vadd.s32 %v858, %v823
      %v862 = vadd.s32 %v859, %v824
      %v863 = vadd.s32 %v857, %v825
      %v864 = vadd.s32 %v858, %v826
      %v865 = vadd.s32 %v859, %v827
      %v866 = vadd.s32 %v857, %v828
      %v867 = vadd.s32 %v858, %v829
      %v868 = vadd.s32 %v859, %v830
      %v869 = vadd.s32 %v857, %v831
      %v870 = vadd.s32 %v858, %v832
      %v871 = vadd.s32 %v859, %v833
      %872 = vst.msk [vmem:[%s166] sm:$0xff] %vm840, %v860
      %873 = vst.msk [vmem:[%s166 + $0x8] sm:$0xff] %vm840, %v861
      %874 = vst.msk [vmem:[%s166 + $0x10] sm:$0x1] %vm843, %v862
      %875 = vst.msk [vmem:[%s166 + $0x18] sm:$0xff] %vm840, %v863
      %876 = vst.msk [vmem:[%s166 + $0x20] sm:$0xff] %vm840, %v864
      %877 = vst.msk [vmem:[%s166 + $0x28] sm:$0x1] %vm843, %v865
      %878 = vst.msk [vmem:[%s166 + $0x30] sm:$0xff] %vm840, %v866
      %879 = vst.msk [vmem:[%s166 + $0x38] sm:$0xff] %vm840, %v867
      %880 = vst.msk [vmem:[%s166 + $0x40] sm:$0x1] %vm843, %v868
      %881 = vst.msk [vmem:[%s166 + $0x48] sm:$0xff] %vm840, %v869
      %882 = vst.msk [vmem:[%s166 + $0x50] sm:$0xff] %vm840, %v870
      %883 = vst.msk [vmem:[%s166 + $0x58] sm:$0x1] %vm843, %v871
      %s884 = smul.u32 4, %s14
      %p885 = scmp.lt.s32.totalorder %s884, 7
      %s886 = scalar_select %p885, %s884, 7
      %s887 = smul.addr %s886, 3
      %s888 = smul.addr %s887, 8
      %s889 = scalar_lea.vmem %s1, %s888
      %s890 = smul.u32 4, %s14
      %p891 = scmp.lt.s32.totalorder %s890, 7
      %s892 = scalar_select %p891, %s890, 7
      %s893 = smul.addr %s892, 3
      %s894 = smul.addr %s893, 8
      %s895 = scalar_lea.vmem %s2, %s894
      // Predicated region
      $region25: #{tpu_custom_call.1} parent=23 // pred_check
        %p896 = pneg %p58
      $region26: #{tpu_custom_call.1} parent=23 // pred_check_branch
        %898 = sbr.rel (%p896) target = $region28
      $region27: #{tpu_custom_call.1} parent=23 // pred_region
        %s899 = smul.u32 4, %s14
      $region28: #{tpu_custom_call.1} parent=23 // pred_fallthru
        _
      // Predicated region
      $region29: #{tpu_custom_call.1} parent=23 // pred_check
        %p900 = pneg %p84
      $region30: #{tpu_custom_call.1} parent=23 // pred_check_branch
        %902 = sbr.rel (%p900) target = $region32
      $region31: #{tpu_custom_call.1} parent=23 // pred_region
        %s903 = smul.u32 4, %s14
      $region32: #{tpu_custom_call.1} parent=23 // pred_fallthru
        _
    $region24: #{tpu_custom_call.1} parent=5 // pred_fallthru
      _
    %p904 = scmp.le.s32.totalorder 2, %s9
    // Predicated region
    $region33: #{tpu_custom_call.1} parent=5 // pred_check
      %p905 = pneg %p904
    $region34: #{tpu_custom_call.1} parent=5 // pred_check_branch
      %907 = sbr.rel (%p905) target = $region36
    $region35: #{tpu_custom_call.1} parent=5 // pred_region
      %s908 = ssub.s32 %s9, 2
      // Predicated region
      $region37: #{tpu_custom_call.1} parent=35 // pred_check
        %p909 = pneg %p64
      $region38: #{tpu_custom_call.1} parent=35 // pred_check_branch
        %911 = sbr.rel (%p909) target = $region40
      $region39: #{tpu_custom_call.1} parent=35 // pred_region
        %s912 = smul.u32 4, %s15
        %p913 = scmp.lt.s32.totalorder %s912, 7
        %s914 = scalar_select %p913, %s912, 7
        %s915 = smul.addr %s914, 3
        %s916 = smul.addr %s915, 8
        %s917 = scalar_lea.vmem %s1, %s916
      $region40: #{tpu_custom_call.1} parent=35 // pred_fallthru
        _
      // Predicated region
      $region41: #{tpu_custom_call.1} parent=35 // pred_check
        %p918 = pneg %p90
      $region42: #{tpu_custom_call.1} parent=35 // pred_check_branch
        %920 = sbr.rel (%p918) target = $region44
      $region43: #{tpu_custom_call.1} parent=35 // pred_region
        %s921 = smul.u32 4, %s15
        %p922 = scmp.lt.s32.totalorder %s921, 7
        %s923 = scalar_select %p922, %s921, 7
        %s924 = smul.addr %s923, 3
        %s925 = smul.addr %s924, 8
        %s926 = scalar_lea.vmem %s2, %s925
      $region44: #{tpu_custom_call.1} parent=35 // pred_fallthru
        _
    $region36: #{tpu_custom_call.1} parent=5 // pred_fallthru
      _
  $region6: #{tpu_custom_call.1} parent=0 // loop_footer
    %s13 = sadd.s32 1, %s9
  $region7: #{tpu_custom_call.1} parent=0 // loop_footer_branch
    %8 = sbr.rel target = $region3
  $region8: #{tpu_custom_call.1} parent=0 // loop_exit
    _

</llo_original>
